<compile_context>
chip_gen: v6e
topology: v6e:2x2x1
jax: 0.10.0
libtpu: 0.0.40
codegen_flags: <defaults>
</compile_context>

<pallas_src>
import functools

import jax
import jax.numpy as jnp
from jax.experimental import pallas as pl
from jax.experimental.pallas import tpu as pltpu


# --------------------------------------------------------------------------
# Pass 1: channel-attention scale = sigmoid(MLP(avg_pool) + MLP(max_pool))
# --------------------------------------------------------------------------
def _channel_scale_kernel(x_ref, w1_ref, w2_ref, o_ref, sum_acc, max_acc, *,
                          hw_total):
    # x_ref: (B, C, hw_tile)   w1: (C, R)   w2: (R, C)   o: (B, C)
    k = pl.program_id(0)

    @pl.when(k == 0)
    def _init():
        sum_acc[...] = jnp.zeros_like(sum_acc)
        max_acc[...] = jnp.full(max_acc.shape, -jnp.inf, dtype=max_acc.dtype)

    x = x_ref[...]
    sum_acc[...] += jnp.sum(x, axis=-1)                       # lane reduction
    max_acc[...] = jnp.maximum(max_acc[...], jnp.max(x, axis=-1))

    @pl.when(k == pl.num_programs(0) - 1)
    def _finalize():
        avg_pool = sum_acc[...] * (1.0 / float(hw_total))     # adaptive_avg_pool2d
        max_pool = max_acc[...]                               # adaptive_max_pool2d
        # Shared MLP: Linear(C->R, bias=False) -> ReLU -> Linear(R->C, bias=False).
        # Run once on the stacked (2B, C) pools => one dot per layer.
        pooled = jnp.concatenate([avg_pool, max_pool], axis=0)           # (2B, C)
        h = jnp.maximum(
            jnp.dot(pooled, w1_ref[...], preferred_element_type=jnp.float32), 0.0)
        att = jnp.dot(h, w2_ref[...], preferred_element_type=jnp.float32)  # (2B, C)
        b = avg_pool.shape[0]
        o_ref[...] = jax.nn.sigmoid(att[:b] + att[b:])


# --------------------------------------------------------------------------
# Pass 2: apply channel scale + shared SpatialGate_Plus, fused, per batch
# --------------------------------------------------------------------------
def _fused_spatial_kernel(x_ref, cs_ref, w_ref, bn_ref, o_ref, *, H, W, K):
    # x_ref : (C, H*W) lane-dense        cs_ref: (C, 1) channel scale
    # w_ref : SMEM (2*K*K,)  flattened conv weight (out=1, in=[avg, max], K, K)
    # bn_ref: SMEM (4,)      [gamma, beta, running_mean, running_var]
    HW = H * W
    PAD = K // 2
    S = PAD * W + PAD                          # max |flattened tap offset|

    xs = x_ref[...] * cs_ref[...]              # channel-gated activations (C, HW)

    # x_compress = cat([mean_c, max_c], dim=1) in flat lane-dense layout.
    avg_c = jnp.mean(xs, axis=0, keepdims=True)    # (1, HW)
    max_c = jnp.max(xs, axis=0, keepdims=True)     # (1, HW)

    col = jax.lax.broadcasted_iota(jnp.int32, (1, HW), 1) % W
    zpad = jnp.zeros((1, S), jnp.float32)

    # 7x7 conv (2 -> 1 channels, bias=False) as 2*K*K shifted taps of the
    # zero-extended flat maps.  The column mask kills row-wrap taps; the zero
    # extension kills out-of-image rows.  Shifts are static value slices
    # (register-level), so there is no padded VMEM scratch to zero-fill and no
    # repeated shifted VMEM reads.
    acc = jnp.zeros((1, HW), jnp.float32)
    for c, comp in ((0, avg_c), (1, max_c)):
        ext = jnp.concatenate([zpad, comp, zpad], axis=1)      # (1, HW + 2S)
        for ki in range(K):
            di = ki - PAD
            for kj in range(K):
                dj = kj - PAD
                s = di * W + dj
                tap = ext[:, S + s:S + s + HW]                 # comp shifted by s
                valid = (col + dj >= 0) & (col + dj < W)
                w = w_ref[c * K * K + ki * K + kj]
                acc = acc + w * jnp.where(valid, tap, 0.0)

    # BatchNorm2d(1, eps=1e-5, affine=True), inference mode (running stats).
    # TODO(synk): training-mode batch statistics are not modeled.
    gamma, beta = bn_ref[0], bn_ref[1]
    rmean, rvar = bn_ref[2], bn_ref[3]
    bn = (acc - rmean) * (gamma * jax.lax.rsqrt(rvar + 1e-5)) + beta

    o_ref[...] = xs * jax.nn.sigmoid(bn)       # (C, HW) * (1, HW)


# --------------------------------------------------------------------------
# Wrappers
# --------------------------------------------------------------------------
def _pick_hw_tile(hw, bc, budget_bytes=8 << 20):
    """Largest multiple-of-128 chunk of H*W that divides H*W and keeps the
    double-buffered (B, C, tile) f32 input block under a conservative VMEM
    budget (safe for v7x's 64 MiB physical / 32 MiB scoped VMEM)."""
    if hw % 128 != 0:
        return hw
    cap = max((budget_bytes // (bc * 4 * 2)) // 128 * 128, 128)
    t = min(cap, hw)
    while t >= 128:
        if hw % t == 0:
            return t
        t -= 128
    return hw


def shared_cbam_apply(x, w1, w2, conv_w_flat, bn_params, K=7):
    B, C, H, W = x.shape
    HW = H * W
    R = w1.shape[1]
    x_flat = x.reshape(B, C, HW)

    # ---- pass 1: (B, C) channel-attention scale ---------------------------
    hw_tile = _pick_hw_tile(HW, B * C)
    cscale = pl.pallas_call(
        functools.partial(_channel_scale_kernel, hw_total=HW),
        out_shape=jax.ShapeDtypeStruct((B, C), jnp.float32),
        grid=(HW // hw_tile,),
        in_specs=[
            pl.BlockSpec((B, C, hw_tile), lambda k: (0, 0, k)),
            pl.BlockSpec((C, R), lambda k: (0, 0)),
            pl.BlockSpec((R, C), lambda k: (0, 0)),
        ],
        out_specs=pl.BlockSpec((B, C), lambda k: (0, 0)),
        scratch_shapes=[pltpu.VMEM((B, C), jnp.float32),   # running sum
                        pltpu.VMEM((B, C), jnp.float32)],  # running max
        compiler_params=pltpu.CompilerParams(
            dimension_semantics=("arbitrary",)),           # HW reduction axis
    )(x_flat, w1, w2)

    # ---- pass 2: fused channel-scale application + shared spatial gate ----
    out_flat = pl.pallas_call(
        functools.partial(_fused_spatial_kernel, H=H, W=W, K=K),
        out_shape=jax.ShapeDtypeStruct((B, C, HW), jnp.float32),
        grid=(B,),
        in_specs=[
            pl.BlockSpec((None, C, HW), lambda b: (b, 0, 0)),
            pl.BlockSpec((None, C, 1), lambda b: (b, 0, 0)),
            pl.BlockSpec(memory_space=pltpu.MemorySpace.SMEM),
            pl.BlockSpec(memory_space=pltpu.MemorySpace.SMEM),
        ],
        out_specs=pl.BlockSpec((None, C, HW), lambda b: (b, 0, 0)),
        compiler_params=pltpu.CompilerParams(
            dimension_semantics=("parallel",)),  # batch axis -> megacore on v7x
    )(x_flat, cscale.reshape(B, C, 1), conv_w_flat, bn_params)
    # TODO(synk): extremely large per-image C*H*W slabs would need an extra
    # spatial tiling level inside pass 2; fine for typical CBAM stage shapes.
    return out_flat.reshape(B, C, H, W)


# --------------------------------------------------------------------------
# SharedCBAMManager: per-name channel gate + one shared spatial gate
# --------------------------------------------------------------------------
class SharedCBAMManagerPallas:
    def __init__(self, channel_configs, reduction_ratio=32, key=None):
        if key is None:
            key = jax.random.PRNGKey(0)
        self.channel_gates = {}
        for i, (name, channels) in enumerate(channel_configs.items()):
            reduced = max(channels // reduction_ratio, 4)
            k1, k2 = jax.random.split(jax.random.fold_in(key, i))
            # w1 = Linear(C->R, bias=False).weight.T ; w2 = Linear(R->C, bias=False).weight.T
            w1 = jax.random.normal(k1, (channels, reduced), jnp.float32) / jnp.sqrt(
                float(channels))
            w2 = jax.random.normal(k2, (reduced, channels), jnp.float32) / jnp.sqrt(
                float(reduced))
            self.channel_gates[name] = (w1, w2)

        # Shared SpatialGate_Plus parameters.
        # Conv2d(2, 1, 7, padding=3, bias=False): in-channel 0 = avg, 1 = max
        # (matches torch.cat([avg_out, max_out], dim=1) in the reference).
        kw = jax.random.fold_in(key, 1000)
        K = 7
        self.spatial_K = K
        self.spatial_w = (
            jax.random.normal(kw, (2 * K * K,), jnp.float32) / float(2 * K * K))
        # BatchNorm2d(1): [gamma, beta, running_mean, running_var]
        self.bn_params = jnp.array([1.0, 0.0, 0.0, 1.0], jnp.float32)

    def __call__(self, x, gate_name):
        if gate_name in self.channel_gates:
            w1, w2 = self.channel_gates[gate_name]
            x = shared_cbam_apply(x, w1, w2, self.spatial_w, self.bn_params,
                                  K=self.spatial_K)
        return x


# --------------------------------------------------------------------------
# Pure-JAX reference (mirrors the PyTorch forward) for correctness checking
# --------------------------------------------------------------------------
def _reference(x, w1, w2, conv_w_flat, bn_params, K=7):
    avg = jnp.mean(x, axis=(2, 3))
    mx = jnp.max(x, axis=(2, 3))
    mlp = lambda v: jnp.maximum(v @ w1, 0.0) @ w2
    cscale = jax.nn.sigmoid(mlp(avg) + mlp(mx))[:, :, None, None]
    xs = x * cscale
    comp = jnp.concatenate([jnp.mean(xs, axis=1, keepdims=True),
                            jnp.max(xs, axis=1, keepdims=True)], axis=1)
    w4 = conv_w_flat.reshape(1, 2, K, K)
    conv = jax.lax.conv_general_dilated(
        comp, w4, window_strides=(1, 1),
        padding=((K // 2, K // 2), (K // 2, K // 2)),
        dimension_numbers=("NCHW", "OIHW", "NCHW"))
    gamma, beta, rmean, rvar = bn_params
    bn = (conv - rmean) * (gamma * jax.lax.rsqrt(rvar + 1e-5)) + beta
    return xs * jax.nn.sigmoid(bn)


if __name__ == "__main__":
    key = jax.random.PRNGKey(0)
    channel_configs = {"stage1": 4, "stage2": 8}
    manager = SharedCBAMManagerPallas(channel_configs, reduction_ratio=32, key=key)

    x = jax.random.normal(jax.random.fold_in(key, 7), (2, 4, 16, 16), jnp.float32)

    y = jax.block_until_ready(manager(x, "stage1"))
    assert y.shape == x.shape and y.dtype == x.dtype

    # Validate against a pure-JAX reference of the PyTorch forward.
    w1, w2 = manager.channel_gates["stage1"]
    y_ref = _reference(x, w1, w2, manager.spatial_w, manager.bn_params,
                       K=manager.spatial_K)
    assert jnp.allclose(y, y_ref, atol=1e-4, rtol=1e-4), \
        float(jnp.max(jnp.abs(y - y_ref)))

    # Unknown gate name -> passthrough (mirrors the PyTorch forward).
    y2 = jax.block_until_ready(manager(x, "does_not_exist"))
    assert (y2 == x).all()

    print("KERNEL_OK")
</pallas_src>

<mosaic_0001>
module attributes {stable_mosaic.version = 11 : i64} {
  func.func @_channel_scale_kernel(%arg0: i32, %arg1: memref<2x4x256xf32, #tpu.memory_space<vmem>>, %arg2: memref<4x4xf32, #tpu.memory_space<vmem>>, %arg3: memref<4x4xf32, #tpu.memory_space<vmem>>, %arg4: memref<2x4xf32, #tpu.memory_space<vmem>>, %arg5: memref<2x4xf32, #tpu.memory_space<vmem>>, %arg6: memref<2x4xf32, #tpu.memory_space<vmem>>) attributes {dimension_semantics = [#tpu.dimension_semantics<arbitrary>], iteration_bounds = array<i64: 1>, scalar_prefetch = 0 : i64, scratch_operands = 2 : i64, tpu.core_type = #tpu.core_type<tc>, window_params = [{transform_indices = @transform_0, window_bounds = array<i64: 2, 4, 256>}, {pipeline_mode = #tpu.pipeline_mode<synchronous>, transform_indices = @transform_1, window_bounds = array<i64: 4, 4>}, {pipeline_mode = #tpu.pipeline_mode<synchronous>, transform_indices = @transform_2, window_bounds = array<i64: 4, 4>}, {pipeline_mode = #tpu.pipeline_mode<synchronous>, transform_indices = @transform_3, window_bounds = array<i64: 2, 4>}]} {
    %c0_i32 = arith.constant 0 : i32
    %0 = arith.cmpi eq, %arg0, %c0_i32 : i32
    %1 = arith.extui %0 : i1 to i32
    %c0_i32_0 = arith.constant 0 : i32
    %2 = arith.cmpi ne, %1, %c0_i32_0 : i32
    scf.if %2 {
      %cst_14 = arith.constant 0.000000e+00 : f32
      %15 = vector.broadcast %cst_14 : f32 to vector<2x4xf32>
      %c0_15 = arith.constant 0 : index
      %c0_16 = arith.constant 0 : index
      %16 = vector.load %arg5[%c0_15, %c0_16] : memref<2x4xf32, #tpu.memory_space<vmem>>, vector<2x4xf32>
      tpu.vector_store %arg5[%c0_15, %c0_16], %15 {strides = array<i32>} : memref<2x4xf32, #tpu.memory_space<vmem>>, vector<2x4xf32>,
      %cst_17 = arith.constant 0xFF800000 : f32
      %17 = vector.broadcast %cst_17 : f32 to vector<2x4xf32>
      %c0_18 = arith.constant 0 : index
      %c0_19 = arith.constant 0 : index
      %18 = vector.load %arg6[%c0_18, %c0_19] : memref<2x4xf32, #tpu.memory_space<vmem>>, vector<2x4xf32>
      tpu.vector_store %arg6[%c0_18, %c0_19], %17 {strides = array<i32>} : memref<2x4xf32, #tpu.memory_space<vmem>>, vector<2x4xf32>,
    } else {
    }
    %c0 = arith.constant 0 : index
    %c0_1 = arith.constant 0 : index
    %c0_2 = arith.constant 0 : index
    %3 = vector.load %arg1[%c0, %c0_1, %c0_2] : memref<2x4x256xf32, #tpu.memory_space<vmem>>, vector<2x4x256xf32>
    %c0_3 = arith.constant 0 : index
    %c0_4 = arith.constant 0 : index
    %4 = vector.load %arg5[%c0_3, %c0_4] : memref<2x4xf32, #tpu.memory_space<vmem>>, vector<2x4xf32>
    %cst = arith.constant dense<0.000000e+00> : vector<2x4xf32>
    %5 = vector.multi_reduction <add>, %3, %cst [2] : vector<2x4x256xf32> to vector<2x4xf32>
    %6 = arith.addf %4, %5 : vector<2x4xf32>
    %c0_5 = arith.constant 0 : index
    %c0_6 = arith.constant 0 : index
    %7 = vector.load %arg5[%c0_5, %c0_6] : memref<2x4xf32, #tpu.memory_space<vmem>>, vector<2x4xf32>
    tpu.vector_store %arg5[%c0_5, %c0_6], %6 {strides = array<i32>} : memref<2x4xf32, #tpu.memory_space<vmem>>, vector<2x4xf32>,
    %c0_7 = arith.constant 0 : index
    %c0_8 = arith.constant 0 : index
    %8 = vector.load %arg6[%c0_7, %c0_8] : memref<2x4xf32, #tpu.memory_space<vmem>>, vector<2x4xf32>
    %cst_9 = arith.constant dense<0xFF800000> : vector<2x4xf32>
    %9 = vector.multi_reduction <maximumf>, %3, %cst_9 [2] : vector<2x4x256xf32> to vector<2x4xf32>
    %10 = arith.maximumf %8, %9 : vector<2x4xf32>
    %c0_10 = arith.constant 0 : index
    %c0_11 = arith.constant 0 : index
    %11 = vector.load %arg6[%c0_10, %c0_11] : memref<2x4xf32, #tpu.memory_space<vmem>>, vector<2x4xf32>
    tpu.vector_store %arg6[%c0_10, %c0_11], %10 {strides = array<i32>} : memref<2x4xf32, #tpu.memory_space<vmem>>, vector<2x4xf32>,
    %c0_i32_12 = arith.constant 0 : i32
    %12 = arith.cmpi eq, %arg0, %c0_i32_12 : i32
    %13 = arith.extui %12 : i1 to i32
    %c0_i32_13 = arith.constant 0 : i32
    %14 = arith.cmpi ne, %13, %c0_i32_13 : i32
    scf.if %14 {
      %c0_14 = arith.constant 0 : index
      %c0_15 = arith.constant 0 : index
      %15 = vector.load %arg5[%c0_14, %c0_15] : memref<2x4xf32, #tpu.memory_space<vmem>>, vector<2x4xf32>
      %cst_16 = arith.constant 3.906250e-03 : f32
      %16 = vector.broadcast %cst_16 : f32 to vector<2x4xf32>
      %17 = arith.mulf %15, %16 : vector<2x4xf32>
      %c0_17 = arith.constant 0 : index
      %c0_18 = arith.constant 0 : index
      %18 = vector.load %arg6[%c0_17, %c0_18] : memref<2x4xf32, #tpu.memory_space<vmem>>, vector<2x4xf32>
      %19 = tpu.concatenate %17, %18 in 0 : vector<2x4xf32>, vector<2x4xf32> -> vector<4x4xf32>
      %c0_19 = arith.constant 0 : index
      %c0_20 = arith.constant 0 : index
      %20 = vector.load %arg2[%c0_19, %c0_20] : memref<4x4xf32, #tpu.memory_space<vmem>>, vector<4x4xf32>
      %cst_21 = arith.constant dense<0.000000e+00> : vector<4x4xf32>
      %21 = tpu.matmul %19, %20, %cst_21 {dimension_numbers = #tpu.dot_dimension_numbers<[1], [0], [0], [1], [0, 0, 1, 1], [], []>} : vector<4x4xf32>, vector<4x4xf32>, vector<4x4xf32> -> vector<4x4xf32>
      %cst_22 = arith.constant 0.000000e+00 : f32
      %22 = vector.broadcast %cst_22 : f32 to vector<4x4xf32>
      %23 = arith.maximumf %21, %22 : vector<4x4xf32>
      %c0_23 = arith.constant 0 : index
      %c0_24 = arith.constant 0 : index
      %24 = vector.load %arg3[%c0_23, %c0_24] : memref<4x4xf32, #tpu.memory_space<vmem>>, vector<4x4xf32>
      %cst_25 = arith.constant dense<0.000000e+00> : vector<4x4xf32>
      %25 = tpu.matmul %23, %24, %cst_25 {dimension_numbers = #tpu.dot_dimension_numbers<[1], [0], [0], [1], [0, 0, 1, 1], [], []>} : vector<4x4xf32>, vector<4x4xf32>, vector<4x4xf32> -> vector<4x4xf32>
      %26 = vector.extract_strided_slice %25 {offsets = [0, 0], sizes = [2, 4], strides = [1, 1]} : vector<4x4xf32> to vector<2x4xf32>
      %27 = vector.extract_strided_slice %25 {offsets = [2, 0], sizes = [2, 4], strides = [1, 1]} : vector<4x4xf32> to vector<2x4xf32>
      %28 = arith.addf %26, %27 : vector<2x4xf32>
      %29 = arith.negf %28 : vector<2x4xf32>
      %30 = math.exp %29 : vector<2x4xf32>
      %cst_26 = arith.constant 1.000000e+00 : f32
      %31 = vector.broadcast %cst_26 : f32 to vector<2x4xf32>
      %32 = arith.addf %31, %30 : vector<2x4xf32>
      %33 = arith.divf %31, %32 : vector<2x4xf32>
      %c0_27 = arith.constant 0 : index
      %c0_28 = arith.constant 0 : index
      %34 = vector.load %arg4[%c0_27, %c0_28] : memref<2x4xf32, #tpu.memory_space<vmem>>, vector<2x4xf32>
      tpu.vector_store %arg4[%c0_27, %c0_28], %33 {strides = array<i32>} : memref<2x4xf32, #tpu.memory_space<vmem>>, vector<2x4xf32>,
    } else {
    }
    return
  }
  func.func @transform_0(%arg0: i32) -> (i32, i32, i32) {
    %c0_i32 = arith.constant 0 : i32
    %c0_i32_0 = arith.constant 0 : i32
    %c0_i32_1 = arith.constant 0 : i32
    return %c0_i32, %c0_i32_0, %arg0 : i32, i32, i32
  }
  func.func @transform_1(%arg0: i32) -> (i32, i32) {
    %c0_i32 = arith.constant 0 : i32
    %c0_i32_0 = arith.constant 0 : i32
    %c0_i32_1 = arith.constant 0 : i32
    return %c0_i32, %c0_i32_0 : i32, i32
  }
  func.func @transform_2(%arg0: i32) -> (i32, i32) {
    %c0_i32 = arith.constant 0 : i32
    %c0_i32_0 = arith.constant 0 : i32
    %c0_i32_1 = arith.constant 0 : i32
    return %c0_i32, %c0_i32_0 : i32, i32
  }
  func.func @transform_3(%arg0: i32) -> (i32, i32) {
    %c0_i32 = arith.constant 0 : i32
    %c0_i32_0 = arith.constant 0 : i32
    %c0_i32_1 = arith.constant 0 : i32
    return %c0_i32, %c0_i32_0 : i32, i32
  }
}

</mosaic_0001>

<llo_original>
// kernel: tpu_custom_call.1
$region0: #{tpu_custom_call.1}
  #allocation0 [shape = 'u32[]', space=smem, size = 0x4, offset = 0x4, fixed_abs, tag = 'smem constant byte address 0x4 - core index']
  #allocation1 [shape = 'u32[144,128]{1,0:T(1,128)}', space=vmem, size = 0x12000, scoped, tag = 'internal scratch']
  #allocation2 [shape = 'f32[2,4]{1,0:T(2,128)}', space=vmem, size = 0x400, scoped, tag = 'scratch operand']
  #allocation3 [shape = 'f32[2,4]{1,0:T(2,128)}', space=vmem, size = 0x400, scoped, tag = 'scratch operand']
  %s0 = inlined_call_operand.hbm [shape: f32[2,4,256], index: 0, kind: input, shape index: {}]
  %s1 = inlined_call_operand.hbm [shape: f32[4,4], index: 1, kind: input, shape index: {}]
  %s2 = inlined_call_operand.hbm [shape: f32[4,4], index: 2, kind: input, shape index: {}]
  %s3 = inlined_call_operand.hbm [shape: f32[2,4], index: 3, kind: output, shape index: {}]
  %s4 = sld [smem:[#allocation0]]
  $region42: #{tpu_custom_call.1} parent=0
    _
  %s6 = ssub.s32 1, %s4
  %s7 = scalar_select 0, %s6, %s4
  $region1: #{tpu_custom_call.1} parent=0
    #allocation4 [shape = 'u8[8192]{0}', space=vmem, size = 0x2000, scoped, tag = 'input window, operand 0, single buffered']
    #allocation5 [shape = 's32[1]{0}', space=sflag, size = 0x4, scoped, tag = 'scoped memory for tpu_custom_call.1']
    #allocation6 [shape = 's32[1]{0}', space=sflag, size = 0x4, scoped, tag = 'scoped memory for tpu_custom_call.1']
    #allocation7 [shape = 'u8[2048]{0}', space=vmem, size = 0x800, scoped, tag = 'input window, operand 1, single buffered']
    #allocation8 [shape = 's32[1]{0}', space=sflag, size = 0x4, scoped, tag = 'scoped memory for tpu_custom_call.1']
    #allocation9 [shape = 'u8[2048]{0}', space=vmem, size = 0x800, scoped, tag = 'input window, operand 2, single buffered']
    #allocation10 [shape = 'u8[1024]{0}', space=vmem, size = 0x400, scoped, tag = 'output window, operand 0, single buffered']
    %8 = vsyncpa [#allocation5], 0
    %9 = vsyncpa [#allocation8], 0
    %10 = vsyncpa [#allocation6], 0
    // Predicated region
    $region2: #{tpu_custom_call.1} parent=1 // pred_check
      _
    $region3: #{tpu_custom_call.1} parent=1 // pred_check_branch
      %12 = sbr.rel (0) target = $region5
    $region4: #{tpu_custom_call.1} parent=1 // pred_region
      %s14 = ssub.s32 256, 256
      %15 = vsyncadd [#allocation5], %s14
      %s16 = sshll.u32 [#allocation4], 4
      %s17 = int_to_ptr.vmem [resolvable:$true] %s16
      %22 = dma.hbm_to_vmem [thread:$0]  %s0, 256, %s17, [#allocation5], 128, 128, 8
    $region5: #{tpu_custom_call.1} parent=1 // pred_fallthru
      _
    // Predicated region
    $region6: #{tpu_custom_call.1} parent=1 // pred_check
      _
    $region7: #{tpu_custom_call.1} parent=1 // pred_check_branch
      %24 = sbr.rel (0) target = $region9
    $region8: #{tpu_custom_call.1} parent=1 // pred_region
      %s26 = ssub.s32 64, 64
      %27 = vsyncadd [#allocation8], %s26
      %s29 = sshll.u32 [#allocation7], 4
      %s30 = int_to_ptr.vmem [resolvable:$true] %s29
      %32 = dma.hbm_to_vmem [thread:$0]  %s1, 64, %s30, [#allocation8]
    $region9: #{tpu_custom_call.1} parent=1 // pred_fallthru
      _
    // Predicated region
    $region10: #{tpu_custom_call.1} parent=1 // pred_check
      _
    $region11: #{tpu_custom_call.1} parent=1 // pred_check_branch
      %34 = sbr.rel (0) target = $region13
    $region12: #{tpu_custom_call.1} parent=1 // pred_region
      %s36 = ssub.s32 64, 64
      %37 = vsyncadd [#allocation8], %s36
      %s39 = sshll.u32 [#allocation9], 4
      %s40 = int_to_ptr.vmem [resolvable:$true] %s39
      %42 = dma.hbm_to_vmem [thread:$0]  %s2, 64, %s40, [#allocation8]
    $region13: #{tpu_custom_call.1} parent=1 // pred_fallthru
      _
    // Predicated region
    $region14: #{tpu_custom_call.1} parent=1 // pred_check
      _
    $region15: #{tpu_custom_call.1} parent=1 // pred_check_branch
      %44 = sbr.rel (0) target = $region17
    $region16: #{tpu_custom_call.1} parent=1 // pred_region
      %45 = dma.done [#allocation5], 256
    $region17: #{tpu_custom_call.1} parent=1 // pred_fallthru
      _
    // Predicated region
    $region18: #{tpu_custom_call.1} parent=1 // pred_check
      _
    $region19: #{tpu_custom_call.1} parent=1 // pred_check_branch
      %47 = sbr.rel (0) target = $region21
    $region20: #{tpu_custom_call.1} parent=1 // pred_region
      %48 = dma.done [#allocation8], 64
    $region21: #{tpu_custom_call.1} parent=1 // pred_fallthru
      _
    // Predicated region
    $region22: #{tpu_custom_call.1} parent=1 // pred_check
      _
    $region23: #{tpu_custom_call.1} parent=1 // pred_check_branch
      %50 = sbr.rel (0) target = $region25
    $region24: #{tpu_custom_call.1} parent=1 // pred_region
      %51 = dma.done [#allocation8], 64
    $region25: #{tpu_custom_call.1} parent=1 // pred_fallthru
      _
    %p52 = scmp.eq.s32.totalorder 0, 0
    // Predicated region
    $region26: #{tpu_custom_call.1} parent=1 // pred_check
      %p53 = pneg %p52
    $region27: #{tpu_custom_call.1} parent=1 // pred_check_branch
      %55 = sbr.rel (%p53) target = $region29
    $region28: #{tpu_custom_call.1} parent=1 // pred_region
      %vm56 = vcmask 25600
      %57 = vst.msk [vmem:[#allocation2] sm:$0x3] %vm56, 0.0
      %58 = vst.msk [vmem:[#allocation3] sm:$0x3] %vm56, -inf
    $region29: #{tpu_custom_call.1} parent=1 // pred_fallthru
      _
    %v59 = vld [vmem:[#allocation4] sm:$0xff]
    %v60 = vld [vmem:[#allocation4 + $0x8] sm:$0xff]
    %v61 = vld [vmem:[#allocation2] sm:$0x3]
    %v64 = vcombine.high %v59, %v59
    %v65 = vcombine.high %v60, %v60
    %vm68 = vcmask 1043456
    %v69 = vsel %vm68, %v59, 0.0
    %v70 = vsel %vm68, %v64, 0.0
    %v71 = vadd.f32 %v69, %v70
    %72 = vadd.xlane.f32.xlu0 %v71
    %v73 = vpop.xlane.xlu0 %72
    %v74 = vsel %vm68, %v60, 0.0
    %v75 = vsel %vm68, %v65, 0.0
    %v76 = vadd.f32 %v74, %v75
    %77 = vadd.xlane.f32.xlu0 %v76
    %v78 = vpop.xlane.xlu0 %77
    %v81 = vlaneseq
    %v82 = vand.u32 %v81, 127
    %v83 = vlaneseq
    %v84 = vshrl.u32 %v83, 7
    %v85 = vsub.s32 %v82, %v84
    %v86 = vrot.slane %v73, %v85
    %v87 = vlaneseq
    %v88 = vshrl.u32 %v87, 7
    %v89 = vsub.s32 %v82, %v88
    %v90 = vrot.slane %v78, %v89
    %vm91 = vcmask 1041409
    %v92 = vsel %vm91, %v90, %v86
    %v94 = vadd.f32 %v61, %v92
    %vm95 = vcmask 25600
    %96 = vst.msk [vmem:[#allocation2] sm:$0x3] %vm95, %v94
    %v97 = vld [vmem:[#allocation3] sm:$0x3]
    %v98 = vsel %vm68, %v59, -inf
    %v99 = vsel %vm68, %v64, -inf
    %v100 = vmax.f32 %v98, %v99
    %101 = vmax.xlane.f32.xlu0 %v100
    %v102 = vpop.xlane.xlu0 %101
    %v103 = vsel %vm68, %v60, -inf
    %v104 = vsel %vm68, %v65, -inf
    %v105 = vmax.f32 %v103, %v104
    %106 = vmax.xlane.f32.xlu0 %v105
    %v107 = vpop.xlane.xlu0 %106
    %v110 = vlaneseq
    %v111 = vshrl.u32 %v110, 7
    %v112 = vsub.s32 %v82, %v111
    %v113 = vrot.slane %v102, %v112
    %v114 = vlaneseq
    %v115 = vshrl.u32 %v114, 7
    %v116 = vsub.s32 %v82, %v115
    %v117 = vrot.slane %v107, %v116
    %v118 = vsel %vm91, %v117, %v113
    %v120 = vmax.f32 %v97, %v118
    %121 = vst.msk [vmem:[#allocation3] sm:$0x3] %vm95, %v120
    // Predicated region
    $region30: #{tpu_custom_call.1} parent=1 // pred_check
      %p122 = pneg %p52
    $region31: #{tpu_custom_call.1} parent=1 // pred_check_branch
      %124 = sbr.rel (%p122) target = $region33
    $region32: #{tpu_custom_call.1} parent=1 // pred_region
      %v125 = vld [vmem:[#allocation2] sm:$0x3]
      %v126 = vmul.f32 %v125, 0.00390625
      %v127 = vld [vmem:[#allocation3] sm:$0x3]
      %v129 = vrot.slane %v127, 6
      %vm131 = vcmask 1041408
      %v132 = vsel %vm131, %v126, %v129
      %v133 = vld [vmem:[#allocation7] sm:$0xf]
      %vm134 = vcmask 31744
      %v136 = vsel %vm134, %v132, 0
      %v139 = vsel %vm68, %v133, 0
      %141 = vmatprep.subr.mxu0 0.0
      %142 = vmatpush1.msra.mxu0 0.0
      %143 = vmatprep.subr.mxu0 0.0
      %144 = vmatpush1.msra.mxu0 0.0
      %145 = vmatprep.subr.mxu0 0.0
      %146 = vmatpush1.msra.mxu0 0.0
      %147 = vmatprep.subr.mxu0 0.0
      %148 = vmatpush1.msra.mxu0 0.0
      %149 = vmatprep.subr.mxu0 0.0
      %150 = vmatpush1.msra.mxu0 0.0
      %151 = vmatprep.subr.mxu0 0.0
      %152 = vmatpush1.msra.mxu0 0.0
      %153 = vmatprep.subr.mxu0 0.0
      %154 = vmatpush1.msra.mxu0 0.0
      %155 = vmatprep.subr.mxu0 0.0
      %156 = vmatpush1.msra.mxu0 0.0
      %157 = vmatprep.subr.mxu0 0.0
      %158 = vmatpush1.msra.mxu0 0.0
      %159 = vmatprep.subr.mxu0 0.0
      %160 = vmatpush1.msra.mxu0 0.0
      %161 = vmatprep.subr.mxu0 0.0
      %162 = vmatpush1.msra.mxu0 0.0
      %163 = vmatprep.subr.mxu0 0.0
      %164 = vmatpush1.msra.mxu0 0.0
      %165 = vmatprep.subr.mxu0 0.0
      %166 = vmatpush1.msra.mxu0 0.0
      %167 = vmatprep.subr.mxu0 0.0
      %168 = vmatpush1.msra.mxu0 0.0
      %169 = vmatprep.subr.mxu0 0.0
      %170 = vmatpush1.msra.mxu0 0.0
      %171 = vmatprep.subr.mxu0 0.0
      %172 = vmatpush1.msra.mxu0 %v139
      %173 = vmatprep.subr.mxu0 0.0
      %174 = vmatpush2.msra.mxu0 0.0
      %175 = vmatprep.subr.mxu0 0.0
      %176 = vmatpush2.msra.mxu0 0.0
      %177 = vmatprep.subr.mxu0 0.0
      %178 = vmatpush2.msra.mxu0 0.0
      %179 = vmatprep.subr.mxu0 0.0
      %180 = vmatpush2.msra.mxu0 0.0
      %181 = vmatprep.subr.mxu0 0.0
      %182 = vmatpush2.msra.mxu0 0.0
      %183 = vmatprep.subr.mxu0 0.0
      %184 = vmatpush2.msra.mxu0 0.0
      %185 = vmatprep.subr.mxu0 0.0
      %186 = vmatpush2.msra.mxu0 0.0
      %187 = vmatprep.subr.mxu0 0.0
      %188 = vmatpush2.msra.mxu0 0.0
      %189 = vmatprep.subr.mxu0 0.0
      %190 = vmatpush2.msra.mxu0 0.0
      %191 = vmatprep.subr.mxu0 0.0
      %192 = vmatpush2.msra.mxu0 0.0
      %193 = vmatprep.subr.mxu0 0.0
      %194 = vmatpush2.msra.mxu0 0.0
      %195 = vmatprep.subr.mxu0 0.0
      %196 = vmatpush2.msra.mxu0 0.0
      %197 = vmatprep.subr.mxu0 0.0
      %198 = vmatpush2.msra.mxu0 0.0
      %199 = vmatprep.subr.mxu0 0.0
      %200 = vmatpush2.msra.mxu0 0.0
      %201 = vmatprep.subr.mxu0 0.0
      %202 = vmatpush2.msra.mxu0 0.0
      %203 = vmatprep.subr.mxu0 0.0
      %204 = vmatpush2.msra.mxu0 0.0
      %205 = vmatprep.mubr.f32.mxu0 0.0
      %206 = vmatmul.mubr.f32.gmra.mxu0 %v136
      %v207 = vpop.f32.mrf.mxu0
      %v208 = vadd.f32 0.0, %v207
      %v209 = vpop.f32.mrf.mxu0
      %210 = vdwg.mxu0
      %v211 = vmax.f32 %v208, 0.0
      %v212 = vld [vmem:[#allocation9] sm:$0xf]
      %v214 = vsel %vm134, %v211, 0
      %v217 = vsel %vm68, %v212, 0
      %219 = vmatprep.subr.mxu0 0.0
      %220 = vmatpush1.msra.mxu0 0.0
      %221 = vmatprep.subr.mxu0 0.0
      %222 = vmatpush1.msra.mxu0 0.0
      %223 = vmatprep.subr.mxu0 0.0
      %224 = vmatpush1.msra.mxu0 0.0
      %225 = vmatprep.subr.mxu0 0.0
      %226 = vmatpush1.msra.mxu0 0.0
      %227 = vmatprep.subr.mxu0 0.0
      %228 = vmatpush1.msra.mxu0 0.0
      %229 = vmatprep.subr.mxu0 0.0
      %230 = vmatpush1.msra.mxu0 0.0
      %231 = vmatprep.subr.mxu0 0.0
      %232 = vmatpush1.msra.mxu0 0.0
      %233 = vmatprep.subr.mxu0 0.0
      %234 = vmatpush1.msra.mxu0 0.0
      %235 = vmatprep.subr.mxu0 0.0
      %236 = vmatpush1.msra.mxu0 0.0
      %237 = vmatprep.subr.mxu0 0.0
      %238 = vmatpush1.msra.mxu0 0.0
      %239 = vmatprep.subr.mxu0 0.0
      %240 = vmatpush1.msra.mxu0 0.0
      %241 = vmatprep.subr.mxu0 0.0
      %242 = vmatpush1.msra.mxu0 0.0
      %243 = vmatprep.subr.mxu0 0.0
      %244 = vmatpush1.msra.mxu0 0.0
      %245 = vmatprep.subr.mxu0 0.0
      %246 = vmatpush1.msra.mxu0 0.0
      %247 = vmatprep.subr.mxu0 0.0
      %248 = vmatpush1.msra.mxu0 0.0
      %249 = vmatprep.subr.mxu0 0.0
      %250 = vmatpush1.msra.mxu0 %v217
      %251 = vmatprep.subr.mxu0 0.0
      %252 = vmatpush2.msra.mxu0 0.0
      %253 = vmatprep.subr.mxu0 0.0
      %254 = vmatpush2.msra.mxu0 0.0
      %255 = vmatprep.subr.mxu0 0.0
      %256 = vmatpush2.msra.mxu0 0.0
      %257 = vmatprep.subr.mxu0 0.0
      %258 = vmatpush2.msra.mxu0 0.0
      %259 = vmatprep.subr.mxu0 0.0
      %260 = vmatpush2.msra.mxu0 0.0
      %261 = vmatprep.subr.mxu0 0.0
      %262 = vmatpush2.msra.mxu0 0.0
      %263 = vmatprep.subr.mxu0 0.0
      %264 = vmatpush2.msra.mxu0 0.0
      %265 = vmatprep.subr.mxu0 0.0
      %266 = vmatpush2.msra.mxu0 0.0
      %267 = vmatprep.subr.mxu0 0.0
      %268 = vmatpush2.msra.mxu0 0.0
      %269 = vmatprep.subr.mxu0 0.0
      %270 = vmatpush2.msra.mxu0 0.0
      %271 = vmatprep.subr.mxu0 0.0
      %272 = vmatpush2.msra.mxu0 0.0
      %273 = vmatprep.subr.mxu0 0.0
      %274 = vmatpush2.msra.mxu0 0.0
      %275 = vmatprep.subr.mxu0 0.0
      %276 = vmatpush2.msra.mxu0 0.0
      %277 = vmatprep.subr.mxu0 0.0
      %278 = vmatpush2.msra.mxu0 0.0
      %279 = vmatprep.subr.mxu0 0.0
      %280 = vmatpush2.msra.mxu0 0.0
      %281 = vmatprep.subr.mxu0 0.0
      %282 = vmatpush2.msra.mxu0 0.0
      %283 = vmatprep.mubr.f32.mxu0 0.0
      %284 = vmatmul.mubr.f32.gmra.mxu0 %v214
      %v285 = vpop.f32.mrf.mxu0
      %v286 = vadd.f32 0.0, %v285
      %v287 = vpop.f32.mrf.mxu0
      %288 = vdwg.mxu0
      %v290 = vrot.slane %v286, 2
      %v292 = vadd.f32 %v286, %v290
      %v293 = vxor.u32 %v292, 2147483648
      %v294 = vmul.f32 %v293, 1.442695
      %v295 = vpow.pop %v294
      %v296 = vadd.f32 %v295, 1.0
      %v297 = vrcp.pop %v296
      %v298 = vmul.f32 1.0, %v297
      %299 = vst.msk [vmem:[#allocation10] sm:$0x3] %vm95, %v298
    $region33: #{tpu_custom_call.1} parent=1 // pred_fallthru
      _
    // Predicated region
    $region34: #{tpu_custom_call.1} parent=1 // pred_check
      _
    $region35: #{tpu_custom_call.1} parent=1 // pred_check_branch
      %301 = sbr.rel (0) target = $region37
    $region36: #{tpu_custom_call.1} parent=1 // pred_region
      %s303 = ssub.s32 32, 32
      %304 = vsyncadd [#allocation6], %s303
      %s306 = sshll.u32 [#allocation10], 4
      %s307 = int_to_ptr.vmem [resolvable:$true] %s306
      %309 = dma.vmem_to_hbm [thread:$0]  %s307, 32, %s3, [#allocation6]
    $region37: #{tpu_custom_call.1} parent=1 // pred_fallthru
      _
    // Predicated region
    $region38: #{tpu_custom_call.1} parent=1 // pred_check
      _
    $region39: #{tpu_custom_call.1} parent=1 // pred_check_branch
      %311 = sbr.rel (0) target = $region41
    $region40: #{tpu_custom_call.1} parent=1 // pred_region
      %312 = dma.done [#allocation6], 32
    $region41: #{tpu_custom_call.1} parent=1 // pred_fallthru
      _
    %313 = vsyncpa [#allocation5], 1
    %314 = vsyncpa [#allocation8], 1
    %315 = vsyncpa [#allocation6], 1

</llo_original>
